<compile_context>
chip_gen: v6e
topology: v6e:2x2x1
jax: 0.10.0
libtpu: 0.0.40
codegen_flags: <defaults>
</compile_context>

<pallas_src>
import functools

import jax
import jax.numpy as jnp
from jax.experimental import pallas as pl
from jax.experimental.pallas import tpu as pltpu


# --------------------------------------------------------------------------
# Kernel: for one batch element, apply the linear along d_model for every
# (variable, patch) position.
#   x_ref : (1, nvars, d_model, num_patch)   natural PatchTST layout
#   w_ref : (d_model, patch_len)             torch Linear weight, transposed
#   b_ref : (1, patch_len)
#   o_ref : (1, nvars, num_patch, patch_len)
# --------------------------------------------------------------------------
def _pretrain_head_kernel(x_ref, w_ref, b_ref, o_ref, *, nvars):
    w = w_ref[...]                 # [d_model, patch_len]
    bias = b_ref[...]              # [1, patch_len]
    # nvars is small (channels); static unroll keeps back-to-back MXU work.
    for v in range(nvars):
        xv = x_ref[0, v]           # [d_model, num_patch]
        # y[p, l] = sum_d x[d, p] * w[d, l]  — contract dim 0 of both operands,
        # so the input-side transpose(2,3) never materializes.
        yv = jax.lax.dot_general(
            xv, w,
            dimension_numbers=(((0,), (0,)), ((), ())),
            preferred_element_type=jnp.float32,
        )                          # [num_patch, patch_len], f32 accumulation
        o_ref[0, v] = (yv + bias).astype(o_ref.dtype)


def pretrain_head(x, weight, bias):
    """
    x      : [bs, nvars, d_model, num_patch]
    weight : [patch_len, d_model]   (torch nn.Linear weight)
    bias   : [patch_len]
    returns: [bs, num_patch, nvars, patch_len]
    """
    bs, nvars, d_model, num_patch = x.shape
    patch_len = weight.shape[0]

    w_t = weight.T.astype(x.dtype)            # [d_model, patch_len] (tiny, one-time)
    b2 = bias.reshape(1, patch_len).astype(jnp.float32)

    kern = functools.partial(_pretrain_head_kernel, nvars=nvars)
    out = pl.pallas_call(
        kern,
        out_shape=jax.ShapeDtypeStruct((bs, nvars, num_patch, patch_len), x.dtype),
        grid_spec=pltpu.PrefetchScalarGridSpec(
            num_scalar_prefetch=0,
            grid=(bs,),
            in_specs=[
                # last-two dims at full extent -> valid tiling, full-tile DMAs
                pl.BlockSpec((1, nvars, d_model, num_patch), lambda i: (i, 0, 0, 0)),
                pl.BlockSpec((d_model, patch_len), lambda i: (0, 0)),
                pl.BlockSpec((1, patch_len), lambda i: (0, 0)),
            ],
            out_specs=pl.BlockSpec(
                (1, nvars, num_patch, patch_len), lambda i: (i, 0, 0, 0)
            ),
        ),
        compiler_params=pltpu.CompilerParams(
            # bs axis is independent -> shard across TensorCores on v7x.
            dimension_semantics=("parallel",),
        ),
    )(x, w_t, b2)

    # [bs, nvars, num_patch, patch_len] -> [bs, num_patch, nvars, patch_len]
    # (output tensor is small vs. the input; this is a cheap XLA layout op)
    return out.transpose(0, 2, 1, 3)


# --------------------------------------------------------------------------
# Plain-jnp reference (mirrors the PyTorch module, eval mode)
# --------------------------------------------------------------------------
def reference(x, weight, bias):
    xt = jnp.swapaxes(x, 2, 3)                       # [bs, nvars, num_patch, d_model]
    y = xt @ weight.T + bias                         # [bs, nvars, num_patch, patch_len]
    return jnp.transpose(y, (0, 2, 1, 3))            # [bs, num_patch, nvars, patch_len]


if __name__ == "__main__":
    bs, nvars, d_model, num_patch, patch_len = 2, 4, 32, 16, 16

    key = jax.random.PRNGKey(0)
    kx, kw, kb = jax.random.split(key, 3)
    x = jax.random.normal(kx, (bs, nvars, d_model, num_patch), jnp.float32)
    weight = jax.random.normal(kw, (patch_len, d_model), jnp.float32) * 0.1
    bias = jax.random.normal(kb, (patch_len,), jnp.float32) * 0.1

    out = pretrain_head(x, weight, bias)
    out = jax.block_until_ready(out)

    ref = reference(x, weight, bias)
    assert out.shape == (bs, num_patch, nvars, patch_len), out.shape
    assert jnp.allclose(out, ref, atol=1e-4, rtol=1e-4)

    print("KERNEL_OK")
</pallas_src>

<mosaic_0001>
module attributes {stable_mosaic.version = 11 : i64} {
  func.func @_pretrain_head_kernel(%arg0: i32, %arg1: memref<1x4x32x16xf32, #tpu.memory_space<vmem>>, %arg2: memref<32x16xf32, #tpu.memory_space<vmem>>, %arg3: memref<1x16xf32, #tpu.memory_space<vmem>>, %arg4: memref<1x4x16x16xf32, #tpu.memory_space<vmem>>) attributes {dimension_semantics = [#tpu.dimension_semantics<parallel>], iteration_bounds = array<i64: 2>, scalar_prefetch = 0 : i64, scratch_operands = 0 : i64, tpu.core_type = #tpu.core_type<tc>, window_params = [{transform_indices = @transform_0, window_bounds = array<i64: 1, 4, 32, 16>}, {pipeline_mode = #tpu.pipeline_mode<synchronous>, transform_indices = @transform_1, window_bounds = array<i64: 32, 16>}, {pipeline_mode = #tpu.pipeline_mode<synchronous>, transform_indices = @transform_2, window_bounds = array<i64: 1, 16>}, {transform_indices = @transform_3, window_bounds = array<i64: 1, 4, 16, 16>}]} {
    %c0 = arith.constant 0 : index
    %c0_0 = arith.constant 0 : index
    %0 = vector.load %arg2[%c0, %c0_0] : memref<32x16xf32, #tpu.memory_space<vmem>>, vector<32x16xf32>
    %c0_1 = arith.constant 0 : index
    %c0_2 = arith.constant 0 : index
    %1 = vector.load %arg3[%c0_1, %c0_2] : memref<1x16xf32, #tpu.memory_space<vmem>>, vector<1x16xf32>
    %c0_3 = arith.constant 0 : index
    %c0_4 = arith.constant 0 : index
    %c0_5 = arith.constant 0 : index
    %c0_6 = arith.constant 0 : index
    %2 = vector.load %arg1[%c0_3, %c0_4, %c0_5, %c0_6] : memref<1x4x32x16xf32, #tpu.memory_space<vmem>>, vector<1x1x32x16xf32>
    %3 = vector.shape_cast %2 : vector<1x1x32x16xf32> to vector<32x16xf32>
    %cst = arith.constant dense<0.000000e+00> : vector<16x16xf32>
    %4 = tpu.matmul %3, %0, %cst {dimension_numbers = #tpu.dot_dimension_numbers<[0], [0], [1], [1], [0, 1, 1, 1], [], []>} : vector<32x16xf32>, vector<32x16xf32>, vector<16x16xf32> -> vector<16x16xf32>
    %5 = vector.broadcast %1 : vector<1x16xf32> to vector<16x16xf32>
    %6 = arith.addf %4, %5 : vector<16x16xf32>
    %c0_7 = arith.constant 0 : index
    %c0_8 = arith.constant 0 : index
    %c0_9 = arith.constant 0 : index
    %c0_10 = arith.constant 0 : index
    %7 = vector.load %arg4[%c0_7, %c0_8, %c0_9, %c0_10] : memref<1x4x16x16xf32, #tpu.memory_space<vmem>>, vector<1x1x16x16xf32>
    %8 = vector.shape_cast %7 : vector<1x1x16x16xf32> to vector<16x16xf32>
    %9 = vector.shape_cast %6 : vector<16x16xf32> to vector<1x1x16x16xf32>
    tpu.vector_store %arg4[%c0_7, %c0_8, %c0_9, %c0_10], %9 {strides = array<i32>} : memref<1x4x16x16xf32, #tpu.memory_space<vmem>>, vector<1x1x16x16xf32>,
    %c0_11 = arith.constant 0 : index
    %c1 = arith.constant 1 : index
    %c0_12 = arith.constant 0 : index
    %c0_13 = arith.constant 0 : index
    %10 = vector.load %arg1[%c0_11, %c1, %c0_12, %c0_13] : memref<1x4x32x16xf32, #tpu.memory_space<vmem>>, vector<1x1x32x16xf32>
    %11 = vector.shape_cast %10 : vector<1x1x32x16xf32> to vector<32x16xf32>
    %cst_14 = arith.constant dense<0.000000e+00> : vector<16x16xf32>
    %12 = tpu.matmul %11, %0, %cst_14 {dimension_numbers = #tpu.dot_dimension_numbers<[0], [0], [1], [1], [0, 1, 1, 1], [], []>} : vector<32x16xf32>, vector<32x16xf32>, vector<16x16xf32> -> vector<16x16xf32>
    %13 = vector.broadcast %1 : vector<1x16xf32> to vector<16x16xf32>
    %14 = arith.addf %12, %13 : vector<16x16xf32>
    %c0_15 = arith.constant 0 : index
    %c1_16 = arith.constant 1 : index
    %c0_17 = arith.constant 0 : index
    %c0_18 = arith.constant 0 : index
    %15 = vector.load %arg4[%c0_15, %c1_16, %c0_17, %c0_18] : memref<1x4x16x16xf32, #tpu.memory_space<vmem>>, vector<1x1x16x16xf32>
    %16 = vector.shape_cast %15 : vector<1x1x16x16xf32> to vector<16x16xf32>
    %17 = vector.shape_cast %14 : vector<16x16xf32> to vector<1x1x16x16xf32>
    tpu.vector_store %arg4[%c0_15, %c1_16, %c0_17, %c0_18], %17 {strides = array<i32>} : memref<1x4x16x16xf32, #tpu.memory_space<vmem>>, vector<1x1x16x16xf32>,
    %c0_19 = arith.constant 0 : index
    %c2 = arith.constant 2 : index
    %c0_20 = arith.constant 0 : index
    %c0_21 = arith.constant 0 : index
    %18 = vector.load %arg1[%c0_19, %c2, %c0_20, %c0_21] : memref<1x4x32x16xf32, #tpu.memory_space<vmem>>, vector<1x1x32x16xf32>
    %19 = vector.shape_cast %18 : vector<1x1x32x16xf32> to vector<32x16xf32>
    %cst_22 = arith.constant dense<0.000000e+00> : vector<16x16xf32>
    %20 = tpu.matmul %19, %0, %cst_22 {dimension_numbers = #tpu.dot_dimension_numbers<[0], [0], [1], [1], [0, 1, 1, 1], [], []>} : vector<32x16xf32>, vector<32x16xf32>, vector<16x16xf32> -> vector<16x16xf32>
    %21 = vector.broadcast %1 : vector<1x16xf32> to vector<16x16xf32>
    %22 = arith.addf %20, %21 : vector<16x16xf32>
    %c0_23 = arith.constant 0 : index
    %c2_24 = arith.constant 2 : index
    %c0_25 = arith.constant 0 : index
    %c0_26 = arith.constant 0 : index
    %23 = vector.load %arg4[%c0_23, %c2_24, %c0_25, %c0_26] : memref<1x4x16x16xf32, #tpu.memory_space<vmem>>, vector<1x1x16x16xf32>
    %24 = vector.shape_cast %23 : vector<1x1x16x16xf32> to vector<16x16xf32>
    %25 = vector.shape_cast %22 : vector<16x16xf32> to vector<1x1x16x16xf32>
    tpu.vector_store %arg4[%c0_23, %c2_24, %c0_25, %c0_26], %25 {strides = array<i32>} : memref<1x4x16x16xf32, #tpu.memory_space<vmem>>, vector<1x1x16x16xf32>,
    %c0_27 = arith.constant 0 : index
    %c3 = arith.constant 3 : index
    %c0_28 = arith.constant 0 : index
    %c0_29 = arith.constant 0 : index
    %26 = vector.load %arg1[%c0_27, %c3, %c0_28, %c0_29] : memref<1x4x32x16xf32, #tpu.memory_space<vmem>>, vector<1x1x32x16xf32>
    %27 = vector.shape_cast %26 : vector<1x1x32x16xf32> to vector<32x16xf32>
    %cst_30 = arith.constant dense<0.000000e+00> : vector<16x16xf32>
    %28 = tpu.matmul %27, %0, %cst_30 {dimension_numbers = #tpu.dot_dimension_numbers<[0], [0], [1], [1], [0, 1, 1, 1], [], []>} : vector<32x16xf32>, vector<32x16xf32>, vector<16x16xf32> -> vector<16x16xf32>
    %29 = vector.broadcast %1 : vector<1x16xf32> to vector<16x16xf32>
    %30 = arith.addf %28, %29 : vector<16x16xf32>
    %c0_31 = arith.constant 0 : index
    %c3_32 = arith.constant 3 : index
    %c0_33 = arith.constant 0 : index
    %c0_34 = arith.constant 0 : index
    %31 = vector.load %arg4[%c0_31, %c3_32, %c0_33, %c0_34] : memref<1x4x16x16xf32, #tpu.memory_space<vmem>>, vector<1x1x16x16xf32>
    %32 = vector.shape_cast %31 : vector<1x1x16x16xf32> to vector<16x16xf32>
    %33 = vector.shape_cast %30 : vector<16x16xf32> to vector<1x1x16x16xf32>
    tpu.vector_store %arg4[%c0_31, %c3_32, %c0_33, %c0_34], %33 {strides = array<i32>} : memref<1x4x16x16xf32, #tpu.memory_space<vmem>>, vector<1x1x16x16xf32>,
    return
  }
  func.func @transform_0(%arg0: i32) -> (i32, i32, i32, i32) {
    %c0_i32 = arith.constant 0 : i32
    %c0_i32_0 = arith.constant 0 : i32
    %c0_i32_1 = arith.constant 0 : i32
    %c0_i32_2 = arith.constant 0 : i32
    return %arg0, %c0_i32, %c0_i32_0, %c0_i32_1 : i32, i32, i32, i32
  }
  func.func @transform_1(%arg0: i32) -> (i32, i32) {
    %c0_i32 = arith.constant 0 : i32
    %c0_i32_0 = arith.constant 0 : i32
    %c0_i32_1 = arith.constant 0 : i32
    return %c0_i32, %c0_i32_0 : i32, i32
  }
  func.func @transform_2(%arg0: i32) -> (i32, i32) {
    %c0_i32 = arith.constant 0 : i32
    %c0_i32_0 = arith.constant 0 : i32
    %c0_i32_1 = arith.constant 0 : i32
    return %c0_i32, %c0_i32_0 : i32, i32
  }
  func.func @transform_3(%arg0: i32) -> (i32, i32, i32, i32) {
    %c0_i32 = arith.constant 0 : i32
    %c0_i32_0 = arith.constant 0 : i32
    %c0_i32_1 = arith.constant 0 : i32
    %c0_i32_2 = arith.constant 0 : i32
    return %arg0, %c0_i32, %c0_i32_0, %c0_i32_1 : i32, i32, i32, i32
  }
}

</mosaic_0001>

<llo_original>
// kernel: tpu_custom_call.1
$region0: #{tpu_custom_call.1}
  #allocation0 [shape = 'u32[]', space=smem, size = 0x4, offset = 0x4, fixed_abs, tag = 'smem constant byte address 0x4 - core index']
  #allocation1 [shape = 'u32[144,128]{1,0:T(1,128)}', space=vmem, size = 0x12000, scoped, tag = 'internal scratch']
  %s0 = inlined_call_operand.vmem [shape: f32[2,4,32,16], index: 0, kind: input, shape index: {}]
  %s1 = inlined_call_operand.vmem [shape: f32[32,16], index: 1, kind: input, shape index: {}]
  %s2 = inlined_call_operand.vmem [shape: f32[1,16], index: 2, kind: input, shape index: {}]
  %s3 = inlined_call_operand.hbm [shape: f32[2,4,16,16], index: 3, kind: output, shape index: {}]
  %s4 = sld [smem:[#allocation0]]
  $region45: #{tpu_custom_call.1} parent=0
    _
  %s6 = ssub.s32 1, %s4
  %s7 = scalar_select 0, %s6, %s4
  $region1: #{tpu_custom_call.1} parent=0
    #allocation2 [shape = 'u8[65536]{0}', space=vmem, size = 0x10000, scoped, tag = 'output window, operand 0']
    #allocation3 [shape = 's32[2]{0}', space=sflag, size = 0x8, scoped, tag = 'scoped memory for tpu_custom_call.1']
    %8 = vsyncpa [#allocation3], 0
    %s9 = scalar_lea.sflag [#allocation3], 1
    %10 = vsyncpa %s9, 0
    loop: start=0, step=1, limit=4
    $region2: #{tpu_custom_call.1} parent=1 // loop_pre_header
      _
    $region3: #{tpu_custom_call.1} parent=1 // loop_header
      %s12 = sphi 0, %s16
      %p13 = scmp.ge.s32.totalorder %s12, 4
      %s22 = sphi 0, %s24
      %s25 = sphi 0, %s22
      %s26 = sphi 0, %s25
      %s42 = sphi 0, %s26
      %s46 = sphi 0, %s46
      %s48 = sphi 0, %s46
      %s49 = sphi 0, %s48
      %s63 = sphi 0, %s49
      %s67 = sphi 0, %s67
      %s69 = sphi 0, %s67
      %s70 = sphi 0, %s69
      %s84 = sphi 0, %s70
      %s90 = sphi 0, %s92
      %s93 = sphi 0, %s90
      %s94 = sphi 0, %s93
      %s110 = sphi 0, %s94
    $region4: #{tpu_custom_call.1} parent=1 // loop_header_branch
      %15 = sbr.rel (%p13) target = $region8
    $region5: #{tpu_custom_call.1} parent=1 // loop_body
      %s17 = ssub.s32 %s12, 1
      %s18 = ssub.s32 %s12, 2
      %s19 = sadd.s32 %s12, 1
      %s20 = ssub.s32 %s12, %s19
      %p21 = scmp.eq.s32.totalorder %s20, 0
      %s23 = sadd.s32 %s22, 1
      %s24 = scalar_select %p21, %s22, %s23
      %p27 = pneg %p21
      %p28 = scmp.eq.s32.totalorder %s12, 1
      %p29 = por %p27, %p28
      %p30 = scmp.ne.s32.totalorder %s22, %s25
      %p31 = scmp.eq.s32.totalorder %s12, 0
      %p32 = por %p30, %p31
      %p33 = scmp.ne.s32.totalorder %s22, %s25
      %p34 = scmp.eq.s32.totalorder %s17, 1
      %p35 = por %p33, %p34
      %p36 = scmp.ne.s32.totalorder %s25, %s26
      %p37 = scmp.eq.s32.totalorder %s17, 0
      %p38 = por %p36, %p37
      %p39 = scmp.ne.s32.totalorder %s25, %s26
      %p40 = scmp.eq.s32.totalorder %s18, 1
      %p41 = por %p39, %p40
      %p43 = scmp.ne.s32.totalorder %s26, %s42
      %p44 = scmp.eq.s32.totalorder %s18, 0
      %p45 = por %p43, %p44
      %s47 = sadd.s32 %s46, 1
      %p50 = scmp.eq.s32.totalorder %s12, 1
      %p51 = scmp.ne.s32.totalorder %s46, %s48
      %p52 = scmp.eq.s32.totalorder %s12, 0
      %p53 = por %p51, %p52
      %p54 = scmp.ne.s32.totalorder %s46, %s48
      %p55 = scmp.eq.s32.totalorder %s17, 1
      %p56 = por %p54, %p55
      %p57 = scmp.ne.s32.totalorder %s48, %s49
      %p58 = scmp.eq.s32.totalorder %s17, 0
      %p59 = por %p57, %p58
      %p60 = scmp.ne.s32.totalorder %s48, %s49
      %p61 = scmp.eq.s32.totalorder %s18, 1
      %p62 = por %p60, %p61
      %p64 = scmp.ne.s32.totalorder %s49, %s63
      %p65 = scmp.eq.s32.totalorder %s18, 0
      %p66 = por %p64, %p65
      %s68 = sadd.s32 %s67, 1
      %p71 = scmp.eq.s32.totalorder %s12, 1
      %p72 = scmp.ne.s32.totalorder %s67, %s69
      %p73 = scmp.eq.s32.totalorder %s12, 0
      %p74 = por %p72, %p73
      %p75 = scmp.ne.s32.totalorder %s67, %s69
      %p76 = scmp.eq.s32.totalorder %s17, 1
      %p77 = por %p75, %p76
      %p78 = scmp.ne.s32.totalorder %s69, %s70
      %p79 = scmp.eq.s32.totalorder %s17, 0
      %p80 = por %p78, %p79
      %p81 = scmp.ne.s32.totalorder %s69, %s70
      %p82 = scmp.eq.s32.totalorder %s18, 1
      %p83 = por %p81, %p82
      %p85 = scmp.ne.s32.totalorder %s70, %s84
      %p86 = scmp.eq.s32.totalorder %s18, 0
      %p87 = por %p85, %p86
      %s88 = ssub.s32 %s12, %s19
      %p89 = scmp.eq.s32.totalorder %s88, 0
      %s91 = sadd.s32 %s90, 1
      %s92 = scalar_select %p89, %s90, %s91
      %p95 = pneg %p89
      %p96 = scmp.eq.s32.totalorder %s12, 1
      %p97 = por %p95, %p96
      %p98 = scmp.ne.s32.totalorder %s90, %s93
      %p99 = scmp.eq.s32.totalorder %s12, 0
      %p100 = por %p98, %p99
      %p101 = scmp.ne.s32.totalorder %s90, %s93
      %p102 = scmp.eq.s32.totalorder %s17, 1
      %p103 = por %p101, %p102
      %p104 = scmp.ne.s32.totalorder %s93, %s94
      %p105 = scmp.eq.s32.totalorder %s17, 0
      %p106 = por %p104, %p105
      %p107 = scmp.ne.s32.totalorder %s93, %s94
      %p108 = scmp.eq.s32.totalorder %s18, 1
      %p109 = por %p107, %p108
      %p111 = scmp.ne.s32.totalorder %s94, %s110
      %p112 = scmp.eq.s32.totalorder %s18, 0
      %p113 = por %p111, %p112
      %p114 = scmp.le.s32.totalorder 1, %s12
      %p115 = scmp.lt.s32.totalorder %s12, 3
      %p116 = pnand %p114, %p115
      %p117 = pneg %p116
      // Predicated region
      $region9: #{tpu_custom_call.1} parent=5 // pred_check
        _
      $region10: #{tpu_custom_call.1} parent=5 // pred_check_branch
        %119 = sbr.rel (%p116) target = $region12
      $region11: #{tpu_custom_call.1} parent=5 // pred_region
        %s120 = ssub.s32 %s12, 1
        // Predicated region
        $region13: #{tpu_custom_call.1} parent=11 // pred_check
          %p121 = pneg %p59
        $region14: #{tpu_custom_call.1} parent=11 // pred_check_branch
          %123 = sbr.rel (%p121) target = $region16
        $region15: #{tpu_custom_call.1} parent=11 // pred_region
          _
        $region16: #{tpu_custom_call.1} parent=11 // pred_fallthru
          _
        // Predicated region
        $region17: #{tpu_custom_call.1} parent=11 // pred_check
          %p124 = pneg %p80
        $region18: #{tpu_custom_call.1} parent=11 // pred_check_branch
          %126 = sbr.rel (%p124) target = $region20
        $region19: #{tpu_custom_call.1} parent=11 // pred_region
          _
        $region20: #{tpu_custom_call.1} parent=11 // pred_fallthru
          _
      $region12: #{tpu_custom_call.1} parent=5 // pred_fallthru
        _
      %p127 = scmp.lt.s32.totalorder %s12, 2
      // Predicated region
      $region21: #{tpu_custom_call.1} parent=5 // pred_check
        %p128 = pneg %p127
      $region22: #{tpu_custom_call.1} parent=5 // pred_check_branch
        %130 = sbr.rel (%p128) target = $region24
      $region23: #{tpu_custom_call.1} parent=5 // pred_region
        // Predicated region
        $region25: #{tpu_custom_call.1} parent=23 // pred_check
          %p131 = pneg %p32
        $region26: #{tpu_custom_call.1} parent=23 // pred_check_branch
          %133 = sbr.rel (%p131) target = $region28
        $region27: #{tpu_custom_call.1} parent=23 // pred_region
          %p134 = scmp.lt.s32.totalorder %s12, 1
          %s135 = scalar_select %p134, %s12, 1
          %s136 = smul.addr %s135, 16
          %s137 = smul.addr %s136, 8
          %s138 = scalar_lea.vmem %s0, %s137
        $region28: #{tpu_custom_call.1} parent=23 // pred_fallthru
          _
      $region24: #{tpu_custom_call.1} parent=5 // pred_fallthru
        _
      %p139 = scmp.le.s32.totalorder 1, %s12
      %p140 = scmp.lt.s32.totalorder %s12, 3
      %p141 = pnand %p139, %p140
      %p142 = pneg %p141
      // Predicated region
      $region29: #{tpu_custom_call.1} parent=5 // pred_check
        _
      $region30: #{tpu_custom_call.1} parent=5 // pred_check_branch
        %144 = sbr.rel (%p141) target = $region32
      $region31: #{tpu_custom_call.1} parent=5 // pred_region
        %s145 = ssub.s32 %s12, 1
        %p146 = scmp.lt.s32.totalorder %s17, 1
        %s147 = scalar_select %p146, %s17, 1
        %s148 = smul.addr %s147, 16
        %s149 = smul.addr %s148, 8
        %s150 = scalar_lea.vmem %s0, %s149
        %p151 = pneg %p38
        %p152 = pneg %p35
        %p153 = pneg %p59
        %p154 = pneg %p56
        %p155 = pneg %p80
        %p156 = pneg %p77
        %p157 = pneg %p106
        %p158 = pneg %p103
        %s159 = sand.u32 %s93, 1
        %s160 = scalar_lea.sflag [#allocation3], %s159
        %s161 = sand.u32 %s93, 1
        %s162 = smul.addr %s161, 64
        %s163 = scalar_lea.vmem [#allocation2], %s162
        %p164 = scmp.lt.s32.totalorder %s17, 1
        %s165 = scalar_select %p164, %s17, 1
        %s166 = smul.addr %s165, 16
        %s167 = smul.addr %s166, 8
        %s168 = scalar_lea.vmem %s0, %s167
        %v169 = vld [vmem:[%s1] sm:$0xff]
        %v170 = vld [vmem:[%s1 + $0x8] sm:$0xff]
        %v171 = vld [vmem:[%s1 + $0x10] sm:$0xff]
        %v172 = vld [vmem:[%s1 + $0x18] sm:$0xff]
        %v173 = vld [vmem:[%s2] sm:$0x1]
        %v174 = vld [vmem:[%s168] sm:$0xff]
        %v175 = vld [vmem:[%s168 + $0x8] sm:$0xff]
        %v176 = vld [vmem:[%s168 + $0x10] sm:$0xff]
        %v177 = vld [vmem:[%s168 + $0x18] sm:$0xff]
        %v179 = vlaneseq
        %v180 = vshrl.u32 %v179, 7
        %v181 = vsub.s32 0, %v180
        %v182 = vrot.slane %v173, %v181
        %184 = vxpose.xlu0.b32.start [1/16] %v174, 128
        %185 = vxpose.xlu0.b32.cont [2/16] %v175, 128
        %186 = vxpose.xlu0.b32.cont [3/16] %v176, 128
        %187 = vxpose.xlu0.b32.cont [4/16] %v177, 128
        %188 = vxpose.xlu0.b32.cont [5/16] 0.0, 128
        %189 = vxpose.xlu0.b32.cont [6/16] 0.0, 128
        %190 = vxpose.xlu0.b32.cont [7/16] 0.0, 128
        %191 = vxpose.xlu0.b32.cont [8/16] 0.0, 128
        %192 = vxpose.xlu0.b32.cont [9/16] 0.0, 128
        %193 = vxpose.xlu0.b32.cont [10/16] 0.0, 128
        %194 = vxpose.xlu0.b32.cont [11/16] 0.0, 128
        %195 = vxpose.xlu0.b32.cont [12/16] 0.0, 128
        %196 = vxpose.xlu0.b32.cont [13/16] 0.0, 128
        %197 = vxpose.xlu0.b32.cont [14/16] 0.0, 128
        %198 = vxpose.xlu0.b32.cont [15/16] 0.0, 128
        %199 = vxpose.xlu0.b32.end [16/16] 0.0, 128
        %v200 = vpop.trf.xlu0
        %v201 = vpop.trf.xlu0
        %v202 = vpop.trf.xlu0
        %v203 = vpop.trf.xlu0
        %v204 = vpop.trf.xlu0
        %v205 = vpop.trf.xlu0
        %v206 = vpop.trf.xlu0
        %v207 = vpop.trf.xlu0
        %v208 = vpop.trf.xlu0
        %v209 = vpop.trf.xlu0
        %v210 = vpop.trf.xlu0
        %v211 = vpop.trf.xlu0
        %v212 = vpop.trf.xlu0
        %v213 = vpop.trf.xlu0
        %v214 = vpop.trf.xlu0
        %v215 = vpop.trf.xlu0
        %vm216 = vcmask 261120
        %v218 = vsel %vm216, %v200, 0
        %v221 = vsel %vm216, %v201, 0
        %223 = vmatprep.subr.mxu0 0.0
        %224 = vmatpush1.msra.mxu0 0.0
        %225 = vmatprep.subr.mxu0 0.0
        %226 = vmatpush1.msra.mxu0 0.0
        %227 = vmatprep.subr.mxu0 0.0
        %228 = vmatpush1.msra.mxu0 0.0
        %229 = vmatprep.subr.mxu0 0.0
        %230 = vmatpush1.msra.mxu0 0.0
        %231 = vmatprep.subr.mxu0 0.0
        %232 = vmatpush1.msra.mxu0 0.0
        %233 = vmatprep.subr.mxu0 0.0
        %234 = vmatpush1.msra.mxu0 0.0
        %235 = vmatprep.subr.mxu0 0.0
        %236 = vmatpush1.msra.mxu0 0.0
        %237 = vmatprep.subr.mxu0 0.0
        %238 = vmatpush1.msra.mxu0 0.0
        %239 = vmatprep.subr.mxu0 0.0
        %240 = vmatpush1.msra.mxu0 0.0
        %241 = vmatprep.subr.mxu0 0.0
        %242 = vmatpush1.msra.mxu0 0.0
        %243 = vmatprep.subr.mxu0 0.0
        %244 = vmatpush1.msra.mxu0 0.0
        %245 = vmatprep.subr.mxu0 0.0
        %246 = vmatpush1.msra.mxu0 0.0
        %247 = vmatprep.subr.mxu0 0.0
        %248 = vmatpush1.msra.mxu0 %v172
        %249 = vmatprep.subr.mxu0 0.0
        %250 = vmatpush1.msra.mxu0 %v171
        %251 = vmatprep.subr.mxu0 0.0
        %252 = vmatpush1.msra.mxu0 %v170
        %253 = vmatprep.subr.mxu0 0.0
        %254 = vmatpush1.msra.mxu0 %v169
        %255 = vmatprep.subr.mxu0 0.0
        %256 = vmatpush2.msra.mxu0 0.0
        %257 = vmatprep.subr.mxu0 0.0
        %258 = vmatpush2.msra.mxu0 0.0
        %259 = vmatprep.subr.mxu0 0.0
        %260 = vmatpush2.msra.mxu0 0.0
        %261 = vmatprep.subr.mxu0 0.0
        %262 = vmatpush2.msra.mxu0 0.0
        %263 = vmatprep.subr.mxu0 0.0
        %264 = vmatpush2.msra.mxu0 0.0
        %265 = vmatprep.subr.mxu0 0.0
        %266 = vmatpush2.msra.mxu0 0.0
        %267 = vmatprep.subr.mxu0 0.0
        %268 = vmatpush2.msra.mxu0 0.0
        %269 = vmatprep.subr.mxu0 0.0
        %270 = vmatpush2.msra.mxu0 0.0
        %271 = vmatprep.subr.mxu0 0.0
        %272 = vmatpush2.msra.mxu0 0.0
        %273 = vmatprep.subr.mxu0 0.0
        %274 = vmatpush2.msra.mxu0 0.0
        %275 = vmatprep.subr.mxu0 0.0
        %276 = vmatpush2.msra.mxu0 0.0
        %277 = vmatprep.subr.mxu0 0.0
        %278 = vmatpush2.msra.mxu0 0.0
        %279 = vmatprep.subr.mxu0 0.0
        %280 = vmatpush2.msra.mxu0 0.0
        %281 = vmatprep.subr.mxu0 0.0
        %282 = vmatpush2.msra.mxu0 0.0
        %283 = vmatprep.subr.mxu0 0.0
        %284 = vmatpush2.msra.mxu0 0.0
        %285 = vmatprep.subr.mxu0 0.0
        %286 = vmatpush2.msra.mxu0 0.0
        %287 = vmatprep.mubr.f32.mxu0 0.0
        %288 = vmatmul.mubr.f32.gmra.mxu0 %v218
        %v289 = vpop.f32.mrf.mxu0
        %v290 = vadd.f32 %v182, %v289
        %v291 = vpop.f32.mrf.mxu0
        %292 = vmatprep.mubr.f32.mxu0 0.0
        %293 = vmatmul.mubr.f32.gmra.mxu0 %v221
        %v294 = vpop.f32.mrf.mxu0
        %v295 = vadd.f32 %v182, %v294
        %v296 = vpop.f32.mrf.mxu0
        %297 = vdwg.mxu0
        %vm298 = vcmask 130048
        %299 = vst.msk [vmem:[%s163] sm:$0xff] %vm298, %v290
        %300 = vst.msk [vmem:[%s163 + $0x8] sm:$0xff] %vm298, %v295
        %s301 = scalar_lea.vmem %s168, 32
        %v302 = vld [vmem:[%s301] sm:$0xff]
        %v303 = vld [vmem:[%s301 + $0x8] sm:$0xff]
        %v304 = vld [vmem:[%s301 + $0x10] sm:$0xff]
        %v305 = vld [vmem:[%s301 + $0x18] sm:$0xff]
        %306 = vxpose.xlu0.b32.start [1/16] %v302, 128
        %307 = vxpose.xlu0.b32.cont [2/16] %v303, 128
        %308 = vxpose.xlu0.b32.cont [3/16] %v304, 128
        %309 = vxpose.xlu0.b32.cont [4/16] %v305, 128
        %310 = vxpose.xlu0.b32.cont [5/16] 0.0, 128
        %311 = vxpose.xlu0.b32.cont [6/16] 0.0, 128
        %312 = vxpose.xlu0.b32.cont [7/16] 0.0, 128
        %313 = vxpose.xlu0.b32.cont [8/16] 0.0, 128
        %314 = vxpose.xlu0.b32.cont [9/16] 0.0, 128
        %315 = vxpose.xlu0.b32.cont [10/16] 0.0, 128
        %316 = vxpose.xlu0.b32.cont [11/16] 0.0, 128
        %317 = vxpose.xlu0.b32.cont [12/16] 0.0, 128
        %318 = vxpose.xlu0.b32.cont [13/16] 0.0, 128
        %319 = vxpose.xlu0.b32.cont [14/16] 0.0, 128
        %320 = vxpose.xlu0.b32.cont [15/16] 0.0, 128
        %321 = vxpose.xlu0.b32.end [16/16] 0.0, 128
        %v322 = vpop.trf.xlu0
        %v323 = vpop.trf.xlu0
        %v324 = vpop.trf.xlu0
        %v325 = vpop.trf.xlu0
        %v326 = vpop.trf.xlu0
        %v327 = vpop.trf.xlu0
        %v328 = vpop.trf.xlu0
        %v329 = vpop.trf.xlu0
        %v330 = vpop.trf.xlu0
        %v331 = vpop.trf.xlu0
        %v332 = vpop.trf.xlu0
        %v333 = vpop.trf.xlu0
        %v334 = vpop.trf.xlu0
        %v335 = vpop.trf.xlu0
        %v336 = vpop.trf.xlu0
        %v337 = vpop.trf.xlu0
        %v339 = vsel %vm216, %v322, 0
        %v342 = vsel %vm216, %v323, 0
        %344 = vmatprep.subr.mxu0 0.0
        %345 = vmatpush1.msra.mxu0 0.0
        %346 = vmatprep.subr.mxu0 0.0
        %347 = vmatpush1.msra.mxu0 0.0
        %348 = vmatprep.subr.mxu0 0.0
        %349 = vmatpush1.msra.mxu0 0.0
        %350 = vmatprep.subr.mxu0 0.0
        %351 = vmatpush1.msra.mxu0 0.0
        %352 = vmatprep.subr.mxu0 0.0
        %353 = vmatpush1.msra.mxu0 0.0
        %354 = vmatprep.subr.mxu0 0.0
        %355 = vmatpush1.msra.mxu0 0.0
        %356 = vmatprep.subr.mxu0 0.0
        %357 = vmatpush1.msra.mxu0 0.0
        %358 = vmatprep.subr.mxu0 0.0
        %359 = vmatpush1.msra.mxu0 0.0
        %360 = vmatprep.subr.mxu0 0.0
        %361 = vmatpush1.msra.mxu0 0.0
        %362 = vmatprep.subr.mxu0 0.0
        %363 = vmatpush1.msra.mxu0 0.0
        %364 = vmatprep.subr.mxu0 0.0
        %365 = vmatpush1.msra.mxu0 0.0
        %366 = vmatprep.subr.mxu0 0.0
        %367 = vmatpush1.msra.mxu0 0.0
        %368 = vmatprep.subr.mxu0 0.0
        %369 = vmatpush1.msra.mxu0 %v172
        %370 = vmatprep.subr.mxu0 0.0
        %371 = vmatpush1.msra.mxu0 %v171
        %372 = vmatprep.subr.mxu0 0.0
        %373 = vmatpush1.msra.mxu0 %v170
        %374 = vmatprep.subr.mxu0 0.0
        %375 = vmatpush1.msra.mxu0 %v169
        %376 = vmatprep.subr.mxu0 0.0
        %377 = vmatpush2.msra.mxu0 0.0
        %378 = vmatprep.subr.mxu0 0.0
        %379 = vmatpush2.msra.mxu0 0.0
        %380 = vmatprep.subr.mxu0 0.0
        %381 = vmatpush2.msra.mxu0 0.0
        %382 = vmatprep.subr.mxu0 0.0
        %383 = vmatpush2.msra.mxu0 0.0
        %384 = vmatprep.subr.mxu0 0.0
        %385 = vmatpush2.msra.mxu0 0.0
        %386 = vmatprep.subr.mxu0 0.0
        %387 = vmatpush2.msra.mxu0 0.0
        %388 = vmatprep.subr.mxu0 0.0
        %389 = vmatpush2.msra.mxu0 0.0
        %390 = vmatprep.subr.mxu0 0.0
        %391 = vmatpush2.msra.mxu0 0.0
        %392 = vmatprep.subr.mxu0 0.0
        %393 = vmatpush2.msra.mxu0 0.0
        %394 = vmatprep.subr.mxu0 0.0
        %395 = vmatpush2.msra.mxu0 0.0
        %396 = vmatprep.subr.mxu0 0.0
        %397 = vmatpush2.msra.mxu0 0.0
        %398 = vmatprep.subr.mxu0 0.0
        %399 = vmatpush2.msra.mxu0 0.0
        %400 = vmatprep.subr.mxu0 0.0
        %401 = vmatpush2.msra.mxu0 0.0
        %402 = vmatprep.subr.mxu0 0.0
        %403 = vmatpush2.msra.mxu0 0.0
        %404 = vmatprep.subr.mxu0 0.0
        %405 = vmatpush2.msra.mxu0 0.0
        %406 = vmatprep.subr.mxu0 0.0
        %407 = vmatpush2.msra.mxu0 0.0
        %408 = vmatprep.mubr.f32.mxu0 0.0
        %409 = vmatmul.mubr.f32.gmra.mxu0 %v339
        %v410 = vpop.f32.mrf.mxu0
        %v411 = vadd.f32 %v182, %v410
        %v412 = vpop.f32.mrf.mxu0
        %413 = vmatprep.mubr.f32.mxu0 0.0
        %414 = vmatmul.mubr.f32.gmra.mxu0 %v342
        %v415 = vpop.f32.mrf.mxu0
        %v416 = vadd.f32 %v182, %v415
        %v417 = vpop.f32.mrf.mxu0
        %418 = vdwg.mxu0
        %s419 = scalar_lea.vmem %s163, 16 [#allocation2]
        %420 = vst.msk [vmem:[%s419] sm:$0xff] %vm298, %v411
        %421 = vst.msk [vmem:[%s419 + $0x8] sm:$0xff] %vm298, %v416
        %s422 = scalar_lea.vmem %s168, 64
        %v423 = vld [vmem:[%s422] sm:$0xff]
        %v424 = vld [vmem:[%s422 + $0x8] sm:$0xff]
        %v425 = vld [vmem:[%s422 + $0x10] sm:$0xff]
        %v426 = vld [vmem:[%s422 + $0x18] sm:$0xff]
        %427 = vxpose.xlu0.b32.start [1/16] %v423, 128
        %428 = vxpose.xlu0.b32.cont [2/16] %v424, 128
        %429 = vxpose.xlu0.b32.cont [3/16] %v425, 128
        %430 = vxpose.xlu0.b32.cont [4/16] %v426, 128
        %431 = vxpose.xlu0.b32.cont [5/16] 0.0, 128
        %432 = vxpose.xlu0.b32.cont [6/16] 0.0, 128
        %433 = vxpose.xlu0.b32.cont [7/16] 0.0, 128
        %434 = vxpose.xlu0.b32.cont [8/16] 0.0, 128
        %435 = vxpose.xlu0.b32.cont [9/16] 0.0, 128
        %436 = vxpose.xlu0.b32.cont [10/16] 0.0, 128
        %437 = vxpose.xlu0.b32.cont [11/16] 0.0, 128
        %438 = vxpose.xlu0.b32.cont [12/16] 0.0, 128
        %439 = vxpose.xlu0.b32.cont [13/16] 0.0, 128
        %440 = vxpose.xlu0.b32.cont [14/16] 0.0, 128
        %441 = vxpose.xlu0.b32.cont [15/16] 0.0, 128
        %442 = vxpose.xlu0.b32.end [16/16] 0.0, 128
        %v443 = vpop.trf.xlu0
        %v444 = vpop.trf.xlu0
        %v445 = vpop.trf.xlu0
        %v446 = vpop.trf.xlu0
        %v447 = vpop.trf.xlu0
        %v448 = vpop.trf.xlu0
        %v449 = vpop.trf.xlu0
        %v450 = vpop.trf.xlu0
        %v451 = vpop.trf.xlu0
        %v452 = vpop.trf.xlu0
        %v453 = vpop.trf.xlu0
        %v454 = vpop.trf.xlu0
        %v455 = vpop.trf.xlu0
        %v456 = vpop.trf.xlu0
        %v457 = vpop.trf.xlu0
        %v458 = vpop.trf.xlu0
        %v460 = vsel %vm216, %v443, 0
        %v463 = vsel %vm216, %v444, 0
        %465 = vmatprep.subr.mxu0 0.0
        %466 = vmatpush1.msra.mxu0 0.0
        %467 = vmatprep.subr.mxu0 0.0
        %468 = vmatpush1.msra.mxu0 0.0
        %469 = vmatprep.subr.mxu0 0.0
        %470 = vmatpush1.msra.mxu0 0.0
        %471 = vmatprep.subr.mxu0 0.0
        %472 = vmatpush1.msra.mxu0 0.0
        %473 = vmatprep.subr.mxu0 0.0
        %474 = vmatpush1.msra.mxu0 0.0
        %475 = vmatprep.subr.mxu0 0.0
        %476 = vmatpush1.msra.mxu0 0.0
        %477 = vmatprep.subr.mxu0 0.0
        %478 = vmatpush1.msra.mxu0 0.0
        %479 = vmatprep.subr.mxu0 0.0
        %480 = vmatpush1.msra.mxu0 0.0
        %481 = vmatprep.subr.mxu0 0.0
        %482 = vmatpush1.msra.mxu0 0.0
        %483 = vmatprep.subr.mxu0 0.0
        %484 = vmatpush1.msra.mxu0 0.0
        %485 = vmatprep.subr.mxu0 0.0
        %486 = vmatpush1.msra.mxu0 0.0
        %487 = vmatprep.subr.mxu0 0.0
        %488 = vmatpush1.msra.mxu0 0.0
        %489 = vmatprep.subr.mxu0 0.0
        %490 = vmatpush1.msra.mxu0 %v172
        %491 = vmatprep.subr.mxu0 0.0
        %492 = vmatpush1.msra.mxu0 %v171
        %493 = vmatprep.subr.mxu0 0.0
        %494 = vmatpush1.msra.mxu0 %v170
        %495 = vmatprep.subr.mxu0 0.0
        %496 = vmatpush1.msra.mxu0 %v169
        %497 = vmatprep.subr.mxu0 0.0
        %498 = vmatpush2.msra.mxu0 0.0
        %499 = vmatprep.subr.mxu0 0.0
        %500 = vmatpush2.msra.mxu0 0.0
        %501 = vmatprep.subr.mxu0 0.0
        %502 = vmatpush2.msra.mxu0 0.0
        %503 = vmatprep.subr.mxu0 0.0
        %504 = vmatpush2.msra.mxu0 0.0
        %505 = vmatprep.subr.mxu0 0.0
        %506 = vmatpush2.msra.mxu0 0.0
        %507 = vmatprep.subr.mxu0 0.0
        %508 = vmatpush2.msra.mxu0 0.0
        %509 = vmatprep.subr.mxu0 0.0
        %510 = vmatpush2.msra.mxu0 0.0
        %511 = vmatprep.subr.mxu0 0.0
        %512 = vmatpush2.msra.mxu0 0.0
        %513 = vmatprep.subr.mxu0 0.0
        %514 = vmatpush2.msra.mxu0 0.0
        %515 = vmatprep.subr.mxu0 0.0
        %516 = vmatpush2.msra.mxu0 0.0
        %517 = vmatprep.subr.mxu0 0.0
        %518 = vmatpush2.msra.mxu0 0.0
        %519 = vmatprep.subr.mxu0 0.0
        %520 = vmatpush2.msra.mxu0 0.0
        %521 = vmatprep.subr.mxu0 0.0
        %522 = vmatpush2.msra.mxu0 0.0
        %523 = vmatprep.subr.mxu0 0.0
        %524 = vmatpush2.msra.mxu0 0.0
        %525 = vmatprep.subr.mxu0 0.0
        %526 = vmatpush2.msra.mxu0 0.0
        %527 = vmatprep.subr.mxu0 0.0
        %528 = vmatpush2.msra.mxu0 0.0
        %529 = vmatprep.mubr.f32.mxu0 0.0
        %530 = vmatmul.mubr.f32.gmra.mxu0 %v460
        %v531 = vpop.f32.mrf.mxu0
        %v532 = vadd.f32 %v182, %v531
        %v533 = vpop.f32.mrf.mxu0
        %534 = vmatprep.mubr.f32.mxu0 0.0
        %535 = vmatmul.mubr.f32.gmra.mxu0 %v463
        %v536 = vpop.f32.mrf.mxu0
        %v537 = vadd.f32 %v182, %v536
        %v538 = vpop.f32.mrf.mxu0
        %539 = vdwg.mxu0
        %s540 = scalar_lea.vmem %s163, 32 [#allocation2]
        %541 = vst.msk [vmem:[%s540] sm:$0xff] %vm298, %v532
        %542 = vst.msk [vmem:[%s540 + $0x8] sm:$0xff] %vm298, %v537
        %s543 = scalar_lea.vmem %s168, 96
        %v544 = vld [vmem:[%s543] sm:$0xff]
        %v545 = vld [vmem:[%s543 + $0x8] sm:$0xff]
        %v546 = vld [vmem:[%s543 + $0x10] sm:$0xff]
        %v547 = vld [vmem:[%s543 + $0x18] sm:$0xff]
        %548 = vxpose.xlu0.b32.start [1/16] %v544, 128
        %549 = vxpose.xlu0.b32.cont [2/16] %v545, 128
        %550 = vxpose.xlu0.b32.cont [3/16] %v546, 128
        %551 = vxpose.xlu0.b32.cont [4/16] %v547, 128
        %552 = vxpose.xlu0.b32.cont [5/16] 0.0, 128
        %553 = vxpose.xlu0.b32.cont [6/16] 0.0, 128
        %554 = vxpose.xlu0.b32.cont [7/16] 0.0, 128
        %555 = vxpose.xlu0.b32.cont [8/16] 0.0, 128
        %556 = vxpose.xlu0.b32.cont [9/16] 0.0, 128
        %557 = vxpose.xlu0.b32.cont [10/16] 0.0, 128
        %558 = vxpose.xlu0.b32.cont [11/16] 0.0, 128
        %559 = vxpose.xlu0.b32.cont [12/16] 0.0, 128
        %560 = vxpose.xlu0.b32.cont [13/16] 0.0, 128
        %561 = vxpose.xlu0.b32.cont [14/16] 0.0, 128
        %562 = vxpose.xlu0.b32.cont [15/16] 0.0, 128
        %563 = vxpose.xlu0.b32.end [16/16] 0.0, 128
        %v564 = vpop.trf.xlu0
        %v565 = vpop.trf.xlu0
        %v566 = vpop.trf.xlu0
        %v567 = vpop.trf.xlu0
        %v568 = vpop.trf.xlu0
        %v569 = vpop.trf.xlu0
        %v570 = vpop.trf.xlu0
        %v571 = vpop.trf.xlu0
        %v572 = vpop.trf.xlu0
        %v573 = vpop.trf.xlu0
        %v574 = vpop.trf.xlu0
        %v575 = vpop.trf.xlu0
        %v576 = vpop.trf.xlu0
        %v577 = vpop.trf.xlu0
        %v578 = vpop.trf.xlu0
        %v579 = vpop.trf.xlu0
        %v581 = vsel %vm216, %v564, 0
        %v584 = vsel %vm216, %v565, 0
        %586 = vmatprep.subr.mxu0 0.0
        %587 = vmatpush1.msra.mxu0 0.0
        %588 = vmatprep.subr.mxu0 0.0
        %589 = vmatpush1.msra.mxu0 0.0
        %590 = vmatprep.subr.mxu0 0.0
        %591 = vmatpush1.msra.mxu0 0.0
        %592 = vmatprep.subr.mxu0 0.0
        %593 = vmatpush1.msra.mxu0 0.0
        %594 = vmatprep.subr.mxu0 0.0
        %595 = vmatpush1.msra.mxu0 0.0
        %596 = vmatprep.subr.mxu0 0.0
        %597 = vmatpush1.msra.mxu0 0.0
        %598 = vmatprep.subr.mxu0 0.0
        %599 = vmatpush1.msra.mxu0 0.0
        %600 = vmatprep.subr.mxu0 0.0
        %601 = vmatpush1.msra.mxu0 0.0
        %602 = vmatprep.subr.mxu0 0.0
        %603 = vmatpush1.msra.mxu0 0.0
        %604 = vmatprep.subr.mxu0 0.0
        %605 = vmatpush1.msra.mxu0 0.0
        %606 = vmatprep.subr.mxu0 0.0
        %607 = vmatpush1.msra.mxu0 0.0
        %608 = vmatprep.subr.mxu0 0.0
        %609 = vmatpush1.msra.mxu0 0.0
        %610 = vmatprep.subr.mxu0 0.0
        %611 = vmatpush1.msra.mxu0 %v172
        %612 = vmatprep.subr.mxu0 0.0
        %613 = vmatpush1.msra.mxu0 %v171
        %614 = vmatprep.subr.mxu0 0.0
        %615 = vmatpush1.msra.mxu0 %v170
        %616 = vmatprep.subr.mxu0 0.0
        %617 = vmatpush1.msra.mxu0 %v169
        %618 = vmatprep.subr.mxu0 0.0
        %619 = vmatpush2.msra.mxu0 0.0
        %620 = vmatprep.subr.mxu0 0.0
        %621 = vmatpush2.msra.mxu0 0.0
        %622 = vmatprep.subr.mxu0 0.0
        %623 = vmatpush2.msra.mxu0 0.0
        %624 = vmatprep.subr.mxu0 0.0
        %625 = vmatpush2.msra.mxu0 0.0
        %626 = vmatprep.subr.mxu0 0.0
        %627 = vmatpush2.msra.mxu0 0.0
        %628 = vmatprep.subr.mxu0 0.0
        %629 = vmatpush2.msra.mxu0 0.0
        %630 = vmatprep.subr.mxu0 0.0
        %631 = vmatpush2.msra.mxu0 0.0
        %632 = vmatprep.subr.mxu0 0.0
        %633 = vmatpush2.msra.mxu0 0.0
        %634 = vmatprep.subr.mxu0 0.0
        %635 = vmatpush2.msra.mxu0 0.0
        %636 = vmatprep.subr.mxu0 0.0
        %637 = vmatpush2.msra.mxu0 0.0
        %638 = vmatprep.subr.mxu0 0.0
        %639 = vmatpush2.msra.mxu0 0.0
        %640 = vmatprep.subr.mxu0 0.0
        %641 = vmatpush2.msra.mxu0 0.0
        %642 = vmatprep.subr.mxu0 0.0
        %643 = vmatpush2.msra.mxu0 0.0
        %644 = vmatprep.subr.mxu0 0.0
        %645 = vmatpush2.msra.mxu0 0.0
        %646 = vmatprep.subr.mxu0 0.0
        %647 = vmatpush2.msra.mxu0 0.0
        %648 = vmatprep.subr.mxu0 0.0
        %649 = vmatpush2.msra.mxu0 0.0
        %650 = vmatprep.mubr.f32.mxu0 0.0
        %651 = vmatmul.mubr.f32.gmra.mxu0 %v581
        %v652 = vpop.f32.mrf.mxu0
        %v653 = vadd.f32 %v182, %v652
        %v654 = vpop.f32.mrf.mxu0
        %655 = vmatprep.mubr.f32.mxu0 0.0
        %656 = vmatmul.mubr.f32.gmra.mxu0 %v584
        %v657 = vpop.f32.mrf.mxu0
        %v658 = vadd.f32 %v182, %v657
        %v659 = vpop.f32.mrf.mxu0
        %660 = vdwg.mxu0
        %s661 = scalar_lea.vmem %s163, 48 [#allocation2]
        %662 = vst.msk [vmem:[%s661] sm:$0xff] %vm298, %v653
        %663 = vst.msk [vmem:[%s661 + $0x8] sm:$0xff] %vm298, %v658
        %s664 = sand.u32 %s93, 1
        %s665 = scalar_lea.sflag [#allocation3], %s664
        %s666 = sand.u32 %s93, 1
        %s667 = smul.addr %s666, 64
        %s668 = scalar_lea.vmem [#allocation2], %s667
        // Predicated region
        $region33: #{tpu_custom_call.1} parent=31 // pred_check
          %p669 = pneg %p103
        $region34: #{tpu_custom_call.1} parent=31 // pred_check_branch
          %671 = sbr.rel (%p669) target = $region36
        $region35: #{tpu_custom_call.1} parent=31 // pred_region
          %s673 = ssub.s32 1024, 1024
          %674 = vsyncadd %s665, %s673
          %s675 = smul.addr %s17, 8
          %s676 = smul.addr %s675, 128
          %s677 = scalar_lea.hbm %s3, %s676
          %s678 = sshll.u32 %s668, 4
          %s679 = int_to_ptr.vmem [resolvable:$true] %s678
          %684 = dma.vmem_to_hbm [thread:$0]  %s679, 1024, %s677, %s665, 128, 128, 8
        $region36: #{tpu_custom_call.1} parent=31 // pred_fallthru
          _
      $region32: #{tpu_custom_call.1} parent=5 // pred_fallthru
        _
      %p685 = scmp.le.s32.totalorder 2, %s12
      // Predicated region
      $region37: #{tpu_custom_call.1} parent=5 // pred_check
        %p686 = pneg %p685
      $region38: #{tpu_custom_call.1} parent=5 // pred_check_branch
        %688 = sbr.rel (%p686) target = $region40
      $region39: #{tpu_custom_call.1} parent=5 // pred_region
        %s689 = ssub.s32 %s12, 2
        // Predicated region
        $region41: #{tpu_custom_call.1} parent=39 // pred_check
          %p690 = pneg %p109
        $region42: #{tpu_custom_call.1} parent=39 // pred_check_branch
          %692 = sbr.rel (%p690) target = $region44
        $region43: #{tpu_custom_call.1} parent=39 // pred_region
          %s693 = sand.u32 %s94, 1
          %s694 = scalar_lea.sflag [#allocation3], %s693
          %s695 = sand.u32 %s94, 1
          %s696 = smul.addr %s695, 64
          %s697 = scalar_lea.vmem [#allocation2], %s696
          %698 = dma.done %s694, 1024
        $region44: #{tpu_custom_call.1} parent=39 // pred_fallthru
          _
      $region40: #{tpu_custom_call.1} parent=5 // pred_fallthru
        _
    $region6: #{tpu_custom_call.1} parent=1 // loop_footer
      %s16 = sadd.s32 1, %s12
    $region7: #{tpu_custom_call.1} parent=1 // loop_footer_branch
      %11 = sbr.rel target = $region3
    $region8: #{tpu_custom_call.1} parent=1 // loop_exit
      _
    %699 = vsyncpa [#allocation3], 1
    %s700 = scalar_lea.sflag [#allocation3], 1
    %701 = vsyncpa %s700, 1

</llo_original>
